<compile_context>
chip_gen: v7x
topology: tpu7x:2x2x1
jax: 0.10.0
libtpu: 0.0.40
codegen_flags: <defaults>
</compile_context>

<pallas_src>
import functools

import jax
import jax.numpy as jnp
from jax.experimental import pallas as pl
from jax.experimental.pallas import tpu as pltpu


def _instance_classifier_kernel(x_ref, w_ref, b_ref, o_ref):
    # x_ref: (TM, D) VMEM, w_ref: (D, 1) VMEM (resident), b_ref: (1, 1) SMEM scalar.
    logits = jnp.dot(
        x_ref[...], w_ref[...], preferred_element_type=jnp.float32
    )  # (TM, 1), f32 accumulate on the MXU
    logits = logits + b_ref[0, 0]
    o_ref[...] = jax.nn.sigmoid(logits).astype(o_ref.dtype)


def _pick_tile_m(M, tm_max=2048):
    # Largest tile that streams well: the whole array if it fits in one block
    # (block_shape equal to full dims is always legal), else a 2048-row block
    # (multiple of 8, ~1 MiB/buffer at D=128 f32 -> fits every generation's
    # scoped-VMEM budget with double buffering, incl. v7x's 64 MiB VMEM).
    if M <= tm_max:
        return M
    return tm_max


@functools.partial(jax.jit, static_argnames=("use_bf16",))
def instance_classifier(features_batch, weight, bias, use_bf16=False):
    """
    features_batch: (B, N, D) float32
    weight:         (1, D)    float32  (torch nn.Linear layout: (out, in))
    bias:           (1,)      float32
    returns:        (B, N, 1) float32 = sigmoid(features @ weight.T + bias)

    use_bf16: stream inputs as bf16 (f32 accumulate) for ~2x HBM-bandwidth win;
              off by default to stay bit-close to the f32 torch reference.
    """
    B, N, D = features_batch.shape
    M = B * N
    x = features_batch.reshape(M, D)
    w = weight.reshape(D, 1)                 # transpose torch (1, D) -> (D, 1)
    b = bias.reshape(1, 1).astype(jnp.float32)

    if use_bf16:
        x = x.astype(jnp.bfloat16)
        w = w.astype(jnp.bfloat16)

    TM = _pick_tile_m(M)
    grid_m = pl.cdiv(M, TM)                  # partial last block handled by Pallas

    bytes_in = 2 if use_bf16 else 4
    cost = pl.CostEstimate(
        flops=2 * M * D,
        transcendentals=M,                   # one sigmoid per instance
        bytes_accessed=M * D * bytes_in + D * bytes_in + M * 4 + 4,
    )

    out = pl.pallas_call(
        _instance_classifier_kernel,
        out_shape=jax.ShapeDtypeStruct((M, 1), features_batch.dtype),
        grid_spec=pl.GridSpec(
            grid=(grid_m,),
            in_specs=[
                pl.BlockSpec((TM, D), lambda i: (i, 0)),        # streamed x tile
                pl.BlockSpec((D, 1), lambda i: (0, 0)),         # resident weight
                pl.BlockSpec(memory_space=pltpu.MemorySpace.SMEM),  # bias scalar
            ],
            out_specs=pl.BlockSpec((TM, 1), lambda i: (i, 0)),
        ),
        compiler_params=pltpu.CompilerParams(
            dimension_semantics=("parallel",),  # independent M tiles -> megacore
        ),
        cost_estimate=cost,
    )(x, w, b)

    return out.reshape(B, N, 1)


if __name__ == "__main__":
    key = jax.random.PRNGKey(0)
    k_x, k_w, k_b = jax.random.split(key, 3)

    D = 128  # feature_dim (matches module default)

    # Deterministic "Linear(D, 1)" parameters (synthetic, not a checkpoint).
    bound = 1.0 / jnp.sqrt(D)
    weight = jax.random.uniform(k_w, (1, D), minval=-bound, maxval=bound,
                                dtype=jnp.float32)
    bias = jax.random.uniform(k_b, (1,), minval=-bound, maxval=bound,
                              dtype=jnp.float32)

    # Small case: single-block path (M = 32 <= TM).
    B1, N1 = 2, 16
    feats_small = jax.random.normal(k_x, (B1, N1, D), dtype=jnp.float32)
    out_small = jax.block_until_ready(instance_classifier(feats_small, weight, bias))
    ref_small = jax.nn.sigmoid(feats_small @ weight.T + bias)
    assert out_small.shape == (B1, N1, 1)
    assert jnp.allclose(out_small, ref_small, atol=1e-5, rtol=1e-5)

    # Larger case: exercises multi-tile grid + partial last block (M = 5000).
    B2, N2 = 2, 2500
    feats_big = jax.random.normal(k_x, (B2, N2, D), dtype=jnp.float32)
    out_big = jax.block_until_ready(instance_classifier(feats_big, weight, bias))
    ref_big = jax.nn.sigmoid(feats_big @ weight.T + bias)
    assert out_big.shape == (B2, N2, 1)
    assert jnp.allclose(out_big, ref_big, atol=1e-5, rtol=1e-5)

    print("KERNEL_OK")
</pallas_src>

<mosaic_0001>
module attributes {stable_mosaic.version = 11 : i64} {
  func.func @_instance_classifier_kernel(%arg0: i32, %arg1: memref<32x128xf32, #tpu.memory_space<vmem>>, %arg2: memref<128x1xf32, #tpu.memory_space<vmem>>, %arg3: memref<1x1xf32, #tpu.memory_space<smem>>, %arg4: memref<32x1xf32, #tpu.memory_space<vmem>>) attributes {dimension_semantics = [#tpu.dimension_semantics<parallel>], iteration_bounds = array<i64: 1>, scalar_prefetch = 0 : i64, scratch_operands = 0 : i64, tpu.core_type = #tpu.core_type<tc>, window_params = [{transform_indices = @transform_0, window_bounds = array<i64: 32, 128>}, {pipeline_mode = #tpu.pipeline_mode<synchronous>, transform_indices = @transform_1, window_bounds = array<i64: 128, 1>}, {transform_indices = @transform_2, window_bounds = array<i64: 1, 1>}, {transform_indices = @transform_3, window_bounds = array<i64: 32, 1>}]} {
    %c0 = arith.constant 0 : index
    %c0_0 = arith.constant 0 : index
    %0 = vector.load %arg1[%c0, %c0_0] : memref<32x128xf32, #tpu.memory_space<vmem>>, vector<32x128xf32>
    %c0_1 = arith.constant 0 : index
    %c0_2 = arith.constant 0 : index
    %1 = vector.load %arg2[%c0_1, %c0_2] : memref<128x1xf32, #tpu.memory_space<vmem>>, vector<128x1xf32>
    %cst = arith.constant dense<0.000000e+00> : vector<32x1xf32>
    %2 = tpu.matmul %0, %1, %cst {dimension_numbers = #tpu.dot_dimension_numbers<[1], [0], [0], [1], [0, 0, 1, 1], [], []>} : vector<32x128xf32>, vector<128x1xf32>, vector<32x1xf32> -> vector<32x1xf32>
    %c0_3 = arith.constant 0 : index
    %c0_4 = arith.constant 0 : index
    %3 = memref.load %arg3[%c0_3, %c0_4] : memref<1x1xf32, #tpu.memory_space<smem>>
    %4 = vector.broadcast %3 : f32 to vector<32x1xf32>
    %5 = arith.addf %2, %4 : vector<32x1xf32>
    %6 = arith.negf %5 : vector<32x1xf32>
    %7 = math.exp %6 : vector<32x1xf32>
    %cst_5 = arith.constant 1.000000e+00 : f32
    %8 = vector.broadcast %cst_5 : f32 to vector<32x1xf32>
    %9 = arith.addf %8, %7 : vector<32x1xf32>
    %10 = arith.divf %8, %9 : vector<32x1xf32>
    %c0_6 = arith.constant 0 : index
    %c0_7 = arith.constant 0 : index
    %11 = vector.load %arg4[%c0_6, %c0_7] : memref<32x1xf32, #tpu.memory_space<vmem>>, vector<32x1xf32>
    tpu.vector_store %arg4[%c0_6, %c0_7], %10 {strides = array<i32>} : memref<32x1xf32, #tpu.memory_space<vmem>>, vector<32x1xf32>,
    return
  }
  func.func @transform_0(%arg0: i32) -> (i32, i32) {
    %c0_i32 = arith.constant 0 : i32
    %c0_i32_0 = arith.constant 0 : i32
    return %arg0, %c0_i32 : i32, i32
  }
  func.func @transform_1(%arg0: i32) -> (i32, i32) {
    %c0_i32 = arith.constant 0 : i32
    %c0_i32_0 = arith.constant 0 : i32
    %c0_i32_1 = arith.constant 0 : i32
    return %c0_i32, %c0_i32_0 : i32, i32
  }
  func.func @transform_2(%arg0: i32) -> (i32, i32) {
    %c0_i32 = arith.constant 0 : i32
    %c0_i32_0 = arith.constant 0 : i32
    %c0_i32_1 = arith.constant 0 : i32
    return %c0_i32, %c0_i32_0 : i32, i32
  }
  func.func @transform_3(%arg0: i32) -> (i32, i32) {
    %c0_i32 = arith.constant 0 : i32
    %c0_i32_0 = arith.constant 0 : i32
    return %arg0, %c0_i32 : i32, i32
  }
}

</mosaic_0001>

<llo_original>
// kernel: instance_classifier.1
$region0: #{instance_classifier.1}
  #allocation0 [shape = 'u32[]', space=smem, size = 0x4, offset = 0x4, fixed_abs, tag = 'smem constant byte address 0x4 - core index']
  #allocation1 [shape = 'u32[144,128]{1,0:T(1,128)}', space=vmem, size = 0x12000, scoped, tag = 'internal scratch']
  #allocation2 [shape = 'f32[1,1]{1,0:T(1,128)S(6)}', space=smem, size = 0x200, scoped, tag = 'scoped memory for instance_classifier.1']
  %s0 = inlined_call_operand.vmem [shape: f32[32,128], index: 0, kind: input, shape index: {}]
  %s1 = inlined_call_operand.vmem [shape: f32[128,1], index: 1, kind: input, shape index: {}]
  %s2 = inlined_call_operand.<no memory space> [shape: f32[1,1], index: 2, kind: input, shape index: {}]
  %s3 = inlined_call_operand.vmem [shape: f32[32,1], index: 3, kind: output, shape index: {}]
  %s4 = sld [smem:[#allocation0]]
  $region22: #{instance_classifier.1} parent=0
    _
  %s6 = ssub.s32 1, %s4
  %s7 = scalar_select 0, %s6, %s4
  %8 = sst [smem:[#allocation2]] %s2
  // Predicated region
  $region2: #{instance_classifier.1} parent=0 // pred_check
    _
  $region3: #{instance_classifier.1} parent=0 // pred_check_branch
    %10 = sbr.rel (0) target = $region5
  $region4: #{instance_classifier.1} parent=0 // pred_region
    _
  $region5: #{instance_classifier.1} parent=0 // pred_fallthru
    _
  // Predicated region
  $region6: #{instance_classifier.1} parent=0 // pred_check
    _
  $region7: #{instance_classifier.1} parent=0 // pred_check_branch
    %12 = sbr.rel (0) target = $region9
  $region8: #{instance_classifier.1} parent=0 // pred_region
    _
  $region9: #{instance_classifier.1} parent=0 // pred_fallthru
    _
  // Predicated region
  $region10: #{instance_classifier.1} parent=0 // pred_check
    _
  $region11: #{instance_classifier.1} parent=0 // pred_check_branch
    %14 = sbr.rel (0) target = $region13
  $region12: #{instance_classifier.1} parent=0 // pred_region
    _
  $region13: #{instance_classifier.1} parent=0 // pred_fallthru
    _
  %v15 = vld [vmem:[%s0] sm:$0xff]
  %v16 = vld [vmem:[%s0 + $0x8] sm:$0xff]
  %v17 = vld [vmem:[%s0 + $0x10] sm:$0xff]
  %v18 = vld [vmem:[%s0 + $0x18] sm:$0xff]
  %v19 = vld [vmem:[%s1] sm:$0xff]
  %v20 = vld [vmem:[%s1 + $0x8] sm:$0xff]
  %v21 = vld [vmem:[%s1 + $0x10] sm:$0xff]
  %v22 = vld [vmem:[%s1 + $0x18] sm:$0xff]
  %v23 = vld [vmem:[%s1 + $0x20] sm:$0xff]
  %v24 = vld [vmem:[%s1 + $0x28] sm:$0xff]
  %v25 = vld [vmem:[%s1 + $0x30] sm:$0xff]
  %v26 = vld [vmem:[%s1 + $0x38] sm:$0xff]
  %v27 = vld [vmem:[%s1 + $0x40] sm:$0xff]
  %v28 = vld [vmem:[%s1 + $0x48] sm:$0xff]
  %v29 = vld [vmem:[%s1 + $0x50] sm:$0xff]
  %v30 = vld [vmem:[%s1 + $0x58] sm:$0xff]
  %v31 = vld [vmem:[%s1 + $0x60] sm:$0xff]
  %v32 = vld [vmem:[%s1 + $0x68] sm:$0xff]
  %v33 = vld [vmem:[%s1 + $0x70] sm:$0xff]
  %v34 = vld [vmem:[%s1 + $0x78] sm:$0xff]
  %s35 = sld [smem:[#allocation2]]
  %v36 = vstv %s35
  %37 = vmatprep.subr.mxu0 0.0
  %38 = vmatpush1.msra.mxu0 %v19
  %39 = vmatprep.subr.mxu0 0.0
  %40 = vmatpush1.msra.mxu0 %v20
  %41 = vmatprep.subr.mxu0 0.0
  %42 = vmatpush1.msra.mxu0 %v21
  %43 = vmatprep.subr.mxu0 0.0
  %44 = vmatpush1.msra.mxu0 %v22
  %45 = vmatprep.subr.mxu0 0.0
  %46 = vmatpush1.msra.mxu0 %v23
  %47 = vmatprep.subr.mxu0 0.0
  %48 = vmatpush1.msra.mxu0 %v24
  %49 = vmatprep.subr.mxu0 0.0
  %50 = vmatpush1.msra.mxu0 %v25
  %51 = vmatprep.subr.mxu0 0.0
  %52 = vmatpush1.msra.mxu0 %v26
  %53 = vmatprep.subr.mxu0 0.0
  %54 = vmatpush1.msra.mxu0 %v27
  %55 = vmatprep.subr.mxu0 0.0
  %56 = vmatpush1.msra.mxu0 %v28
  %57 = vmatprep.subr.mxu0 0.0
  %58 = vmatpush1.msra.mxu0 %v29
  %59 = vmatprep.subr.mxu0 0.0
  %60 = vmatpush1.msra.mxu0 %v30
  %61 = vmatprep.subr.mxu0 0.0
  %62 = vmatpush1.msra.mxu0 %v31
  %63 = vmatprep.subr.mxu0 0.0
  %64 = vmatpush1.msra.mxu0 %v32
  %65 = vmatprep.subr.mxu0 0.0
  %66 = vmatpush1.msra.mxu0 %v33
  %67 = vmatprep.subr.mxu0 0.0
  %68 = vmatpush1.msra.mxu0 %v34
  %69 = vmatprep.subr.mxu0 0.0
  %70 = vmatpush1.msra.mxu0 0.0
  %71 = vmatprep.subr.mxu0 0.0
  %72 = vmatpush1.msra.mxu0 0.0
  %73 = vmatprep.subr.mxu0 0.0
  %74 = vmatpush1.msra.mxu0 0.0
  %75 = vmatprep.subr.mxu0 0.0
  %76 = vmatpush1.msra.mxu0 0.0
  %77 = vmatprep.subr.mxu0 0.0
  %78 = vmatpush1.msra.mxu0 0.0
  %79 = vmatprep.subr.mxu0 0.0
  %80 = vmatpush1.msra.mxu0 0.0
  %81 = vmatprep.subr.mxu0 0.0
  %82 = vmatpush1.msra.mxu0 0.0
  %83 = vmatprep.subr.mxu0 0.0
  %84 = vmatpush1.msra.mxu0 0.0
  %85 = vmatprep.subr.mxu0 0.0
  %86 = vmatpush1.msra.mxu0 0.0
  %87 = vmatprep.subr.mxu0 0.0
  %88 = vmatpush1.msra.mxu0 0.0
  %89 = vmatprep.subr.mxu0 0.0
  %90 = vmatpush1.msra.mxu0 0.0
  %91 = vmatprep.subr.mxu0 0.0
  %92 = vmatpush1.msra.mxu0 0.0
  %93 = vmatprep.subr.mxu0 0.0
  %94 = vmatpush1.msra.mxu0 0.0
  %95 = vmatprep.subr.mxu0 0.0
  %96 = vmatpush1.msra.mxu0 0.0
  %97 = vmatprep.subr.mxu0 0.0
  %98 = vmatpush1.msra.mxu0 0.0
  %99 = vmatprep.subr.mxu0 0.0
  %100 = vmatpush1.msra.mxu0 0.0
  %101 = vmatprep.mubr.f32.mxu0 0.0
  %102 = vmatmul.mubr.f32.gmra.mrb[0].mxu0 %v15
  %v103 = vpop.f32.mrb[0].mxu0
  %v104 = vadd.f32 %v36, %v103
  %v105 = vpop.f32.mrb[0].mxu0
  %106 = vmatprep.mubr.f32.mxu0 0.0
  %107 = vmatmul.mubr.f32.gmra.mrb[0].mxu0 %v16
  %v108 = vpop.f32.mrb[0].mxu0
  %v109 = vadd.f32 %v36, %v108
  %v110 = vpop.f32.mrb[0].mxu0
  %111 = vmatprep.mubr.f32.mxu0 0.0
  %112 = vmatmul.mubr.f32.gmra.mrb[0].mxu0 %v17
  %v113 = vpop.f32.mrb[0].mxu0
  %v114 = vadd.f32 %v36, %v113
  %v115 = vpop.f32.mrb[0].mxu0
  %116 = vmatprep.mubr.f32.mxu0 0.0
  %117 = vmatmul.mubr.f32.gmra.mrb[0].mxu0 %v18
  %v118 = vpop.f32.mrb[0].mxu0
  %v119 = vadd.f32 %v36, %v118
  %v120 = vpop.f32.mrb[0].mxu0
  %121 = vdwg.mxu0
  %v122 = vxor.u32 %v104, 2147483648
  %v123 = vxor.u32 %v109, 2147483648
  %v124 = vxor.u32 %v114, 2147483648
  %v125 = vxor.u32 %v119, 2147483648
  %v126 = vmul.f32 %v122, 1.442695
  %v127 = vpow.pop %v126
  %v128 = vmul.f32 %v123, 1.442695
  %v129 = vpow.pop %v128
  %v130 = vmul.f32 %v124, 1.442695
  %v131 = vpow.pop %v130
  %v132 = vmul.f32 %v125, 1.442695
  %v133 = vpow.pop %v132
  %v134 = vadd.f32 %v127, 1.0
  %v135 = vadd.f32 %v129, 1.0
  %v136 = vadd.f32 %v131, 1.0
  %v137 = vadd.f32 %v133, 1.0
  %v138 = vrcp.pop %v134
  %v139 = vmul.f32 1.0, %v138
  %v140 = vrcp.pop %v135
  %v141 = vmul.f32 1.0, %v140
  %v142 = vrcp.pop %v136
  %v143 = vmul.f32 1.0, %v142
  %v144 = vrcp.pop %v137
  %v145 = vmul.f32 1.0, %v144
  %vm146 = vcmask 7168
  %147 = vst.msk [vmem:[%s3] sm:$0xff] %vm146, %v139
  %148 = vst.msk [vmem:[%s3 + $0x8] sm:$0xff] %vm146, %v141
  %149 = vst.msk [vmem:[%s3 + $0x10] sm:$0xff] %vm146, %v143
  %150 = vst.msk [vmem:[%s3 + $0x18] sm:$0xff] %vm146, %v145
  // Predicated region
  $region14: #{instance_classifier.1} parent=0 // pred_check
    _
  $region15: #{instance_classifier.1} parent=0 // pred_check_branch
    %152 = sbr.rel (0) target = $region17
  $region16: #{instance_classifier.1} parent=0 // pred_region
    _
  $region17: #{instance_classifier.1} parent=0 // pred_fallthru
    _
  // Predicated region
  $region18: #{instance_classifier.1} parent=0 // pred_check
    _
  $region19: #{instance_classifier.1} parent=0 // pred_check_branch
    %154 = sbr.rel (0) target = $region21
  $region20: #{instance_classifier.1} parent=0 // pred_region
    _
  $region21: #{instance_classifier.1} parent=0 // pred_fallthru
    _

</llo_original>
